<compile_context>
chip_gen: v7x
topology: tpu7x:2x2x1
jax: 0.10.0
libtpu: 0.0.40
codegen_flags: <defaults>
</compile_context>

<pallas_src>
import functools

import jax
import jax.numpy as jnp
from jax import lax
from jax.experimental import pallas as pl
from jax.experimental.pallas import tpu as pltpu

_LANES = 128
_ALIGN = 32                  # row-block alignment: covers f32/bf16/int8 sublane tiles
_BLOCK_BYTES = 9 * 2**20     # ~9 MiB of inputs per block -> ~18 MiB double-buffered


def _celoss_kernel(p_ref, lab_ref, out_ref, *, tr, num_chunks, valid_in_last):
    # p_ref: (2, TR, 128) logits (native dtype); lab_ref: (TR, 128) int;
    # out_ref: (1, 128) f32 per-step partial sums.
    l0 = p_ref[0].astype(jnp.float32)
    l1 = p_ref[1].astype(jnp.float32)
    d = l1 - l0
    # 2-class CE: label==1 -> softplus(l0-l1) = softplus(-d); label==0 -> softplus(d).
    # softplus(z) = relu(z) + log(1 + exp(-|z|)) and |z| == |d| for either label,
    # so the exp/log chain is label-independent; only the relu arg is selected.
    z = jnp.where(lab_ref[...] != 0, -d, d)
    # NOTE: log(1 + x) kept (instead of log1p) for guaranteed Mosaic lowering;
    # the extra add rides in VALU slack on all generations.
    loss = jnp.maximum(z, 0.0) + jnp.log(1.0 + jnp.exp(-jnp.abs(d)))

    if valid_in_last is None:
        # no padding / OOB anywhere: unmasked partial sum on every step
        out_ref[...] = jnp.sum(loss, axis=0, keepdims=True)
    else:
        c = pl.program_id(1)

        @pl.when(c != num_chunks - 1)
        def _():
            out_ref[...] = jnp.sum(loss, axis=0, keepdims=True)

        @pl.when(c == num_chunks - 1)
        def _():
            # mask only the last chunk; offsets are chunk-relative (< TR*128)
            row = lax.broadcasted_iota(jnp.int32, (tr, _LANES), 0)
            lane = lax.broadcasted_iota(jnp.int32, (tr, _LANES), 1)
            valid = row * _LANES + lane < valid_in_last
            out_ref[...] = jnp.sum(jnp.where(valid, loss, 0.0), axis=0,
                                   keepdims=True)


def ce_loss(predict, label):
    """predict: (B, 2, H, W) float logits (any float dtype);
    label: (B, 1, H, W) {0,1} ints (any int dtype).

    Returns the scalar mean cross-entropy, matching
    nn.CrossEntropyLoss()(predict.permute(0,2,3,1).reshape(-1,2),
                          label.permute(0,2,3,1).reshape(-1))."""
    B, C, H, W = predict.shape
    assert C == 2, "CELoss expects 2-class logits"
    HW = H * W

    if HW % _LANES == 0:
        p = predict.reshape(B, 2, HW)        # zero-copy view of contiguous NCHW
        lab = label.reshape(B, HW)
    else:                                    # rare ragged case: pad to lane width
        pad = _LANES - HW % _LANES
        p = jnp.pad(predict.reshape(B, 2, HW), ((0, 0), (0, 0), (0, pad)))
        lab = jnp.pad(label.reshape(B, HW), ((0, 0), (0, pad)))
    R = p.shape[-1] // _LANES
    p = p.reshape(B, 2, R, _LANES)           # native dtype: no wrapper upcast
    lab = lab.reshape(B, R, _LANES)          # native int dtype: no extra HBM pass

    # Row-block size: large enough to amortize per-step overhead, small enough
    # that a double-buffered (logits + labels) block stays ~18 MiB.
    row_bytes = _LANES * (2 * p.dtype.itemsize + lab.dtype.itemsize)
    tr_cap = max(_ALIGN, (_BLOCK_BYTES // row_bytes) // _ALIGN * _ALIGN)
    if R <= tr_cap:
        TR = R                               # full dim (always layout-legal)
        # v7x megacore: a single-step grid leaves one TensorCore idle.
        if B == 1 and R >= 2 * _ALIGN:
            TR = -(-((R + 1) // 2) // _ALIGN) * _ALIGN
    else:
        TR = tr_cap                          # multiple of 32 (layout-legal)
    num_chunks = -(-R // TR)
    covered = num_chunks * TR * _LANES
    # number of real pixels in the last chunk (None => no masking needed at all)
    valid_in_last = None if covered == HW else HW - (num_chunks - 1) * TR * _LANES

    kernel = functools.partial(_celoss_kernel, tr=TR, num_chunks=num_chunks,
                               valid_in_last=valid_in_last)

    partials = pl.pallas_call(
        kernel,
        out_shape=jax.ShapeDtypeStruct((B, num_chunks, 1, _LANES), jnp.float32),
        grid=(B, num_chunks),
        in_specs=[
            pl.BlockSpec((None, 2, TR, _LANES), lambda b, c: (b, 0, c, 0)),
            pl.BlockSpec((None, TR, _LANES), lambda b, c: (b, c, 0)),
        ],
        out_specs=pl.BlockSpec((None, None, 1, _LANES),
                               lambda b, c: (b, c, 0, 0)),
        compiler_params=pltpu.CompilerParams(
            dimension_semantics=("parallel", "parallel"),
            vmem_limit_bytes=32 * 1024 * 1024),
    )(p, lab)

    # tiny epilogue: sum the per-step lane-dense partials and take the mean
    return jnp.sum(partials) / jnp.float32(B * HW)


if __name__ == "__main__":
    key = jax.random.PRNGKey(0)
    k1, k2 = jax.random.split(key)
    B, H, W = 2, 16, 16
    predict = jax.random.normal(k1, (B, 2, H, W), dtype=jnp.float32)
    label = jax.random.bernoulli(k2, 0.5, (B, 1, H, W)).astype(jnp.int32)

    loss = ce_loss(predict, label)
    jax.block_until_ready(loss)

    # sanity check against a pure-JAX reference of nn.CrossEntropyLoss (mean)
    logits = jnp.transpose(predict, (0, 2, 3, 1)).reshape(-1, 2)
    labels = label[:, 0].reshape(-1)
    lse = jax.nn.logsumexp(logits, axis=-1)
    ref = jnp.mean(lse - jnp.take_along_axis(
        logits, labels[:, None], axis=-1)[:, 0])
    assert jnp.allclose(loss, ref, atol=1e-5, rtol=1e-5), (loss, ref)

    print("KERNEL_OK")
</pallas_src>

<mosaic_0001>
module attributes {stable_mosaic.version = 11 : i64} {
  func.func @_celoss_kernel(%arg0: i32, %arg1: i32, %arg2: memref<1x2x2x128xf32, #tpu.memory_space<vmem>>, %arg3: memref<1x2x128xi32, #tpu.memory_space<vmem>>, %arg4: memref<1x1x1x128xf32, #tpu.memory_space<vmem>>) attributes {dimension_semantics = [#tpu.dimension_semantics<parallel>, #tpu.dimension_semantics<parallel>], iteration_bounds = array<i64: 2, 1>, scalar_prefetch = 0 : i64, scratch_operands = 0 : i64, tpu.core_type = #tpu.core_type<tc>, window_params = [{transform_indices = @transform_0, window_bounds = array<i64: 1, 2, 2, 128>}, {transform_indices = @transform_1, window_bounds = array<i64: 1, 2, 128>}, {transform_indices = @transform_2, window_bounds = array<i64: 1, 1, 1, 128>}]} {
    %c0 = arith.constant 0 : index
    %c0_0 = arith.constant 0 : index
    %c0_1 = arith.constant 0 : index
    %c0_2 = arith.constant 0 : index
    %0 = vector.load %arg2[%c0, %c0_0, %c0_1, %c0_2] : memref<1x2x2x128xf32, #tpu.memory_space<vmem>>, vector<1x1x2x128xf32>
    %1 = vector.shape_cast %0 : vector<1x1x2x128xf32> to vector<2x128xf32>
    %c0_3 = arith.constant 0 : index
    %c1 = arith.constant 1 : index
    %c0_4 = arith.constant 0 : index
    %c0_5 = arith.constant 0 : index
    %2 = vector.load %arg2[%c0_3, %c1, %c0_4, %c0_5] : memref<1x2x2x128xf32, #tpu.memory_space<vmem>>, vector<1x1x2x128xf32>
    %3 = vector.shape_cast %2 : vector<1x1x2x128xf32> to vector<2x128xf32>
    %4 = arith.subf %3, %1 : vector<2x128xf32>
    %c0_6 = arith.constant 0 : index
    %c0_7 = arith.constant 0 : index
    %c0_8 = arith.constant 0 : index
    %5 = vector.load %arg3[%c0_6, %c0_7, %c0_8] : memref<1x2x128xi32, #tpu.memory_space<vmem>>, vector<1x2x128xi32>
    %6 = vector.shape_cast %5 : vector<1x2x128xi32> to vector<2x128xi32>
    %c0_i32 = arith.constant 0 : i32
    %7 = vector.broadcast %c0_i32 : i32 to vector<2x128xi32>
    %8 = arith.cmpi ne, %6, %7 : vector<2x128xi32>
    %cst = arith.constant 0.000000e+00 : f32
    %9 = vector.broadcast %cst : f32 to vector<2x128xf32>
    %10 = arith.subf %9, %4 : vector<2x128xf32>
    %11 = arith.select %8, %10, %4 : vector<2x128xi1>, vector<2x128xf32>
    %cst_9 = arith.constant 0.000000e+00 : f32
    %12 = vector.broadcast %cst_9 : f32 to vector<2x128xf32>
    %13 = arith.maximumf %11, %12 : vector<2x128xf32>
    %14 = math.absf %4 : vector<2x128xf32>
    %cst_10 = arith.constant 0.000000e+00 : f32
    %15 = vector.broadcast %cst_10 : f32 to vector<2x128xf32>
    %16 = arith.subf %15, %14 : vector<2x128xf32>
    %17 = math.exp %16 : vector<2x128xf32>
    %cst_11 = arith.constant 1.000000e+00 : f32
    %18 = vector.broadcast %cst_11 : f32 to vector<2x128xf32>
    %19 = arith.addf %18, %17 : vector<2x128xf32>
    %20 = math.log %19 : vector<2x128xf32>
    %21 = arith.addf %13, %20 : vector<2x128xf32>
    %cst_12 = arith.constant dense<0.000000e+00> : vector<128xf32>
    %22 = vector.multi_reduction <add>, %21, %cst_12 [0] : vector<2x128xf32> to vector<128xf32>
    %23 = vector.shape_cast %22 : vector<128xf32> to vector<1x128xf32>
    %c0_13 = arith.constant 0 : index
    %c0_14 = arith.constant 0 : index
    %c0_15 = arith.constant 0 : index
    %c0_16 = arith.constant 0 : index
    %24 = vector.load %arg4[%c0_13, %c0_14, %c0_15, %c0_16] : memref<1x1x1x128xf32, #tpu.memory_space<vmem>>, vector<1x1x1x128xf32>
    %25 = vector.shape_cast %24 : vector<1x1x1x128xf32> to vector<1x128xf32>
    %26 = vector.shape_cast %23 : vector<1x128xf32> to vector<1x1x1x128xf32>
    tpu.vector_store %arg4[%c0_13, %c0_14, %c0_15, %c0_16], %26 {strides = array<i32>} : memref<1x1x1x128xf32, #tpu.memory_space<vmem>>, vector<1x1x1x128xf32>,
    return
  }
  func.func @transform_0(%arg0: i32, %arg1: i32) -> (i32, i32, i32, i32) {
    %c0_i32 = arith.constant 0 : i32
    %c0_i32_0 = arith.constant 0 : i32
    %c0_i32_1 = arith.constant 0 : i32
    return %arg0, %c0_i32, %arg1, %c0_i32_0 : i32, i32, i32, i32
  }
  func.func @transform_1(%arg0: i32, %arg1: i32) -> (i32, i32, i32) {
    %c0_i32 = arith.constant 0 : i32
    %c0_i32_0 = arith.constant 0 : i32
    return %arg0, %arg1, %c0_i32 : i32, i32, i32
  }
  func.func @transform_2(%arg0: i32, %arg1: i32) -> (i32, i32, i32, i32) {
    %c0_i32 = arith.constant 0 : i32
    %c0_i32_0 = arith.constant 0 : i32
    %c0_i32_1 = arith.constant 0 : i32
    return %arg0, %arg1, %c0_i32, %c0_i32_0 : i32, i32, i32, i32
  }
}

</mosaic_0001>

<llo_original>
// kernel: tpu_custom_call.1
$region0: #{tpu_custom_call.1}
  #allocation0 [shape = 'u32[]', space=smem, size = 0x4, offset = 0x4, fixed_abs, tag = 'smem constant byte address 0x4 - core index']
  #allocation1 [shape = 'u32[144,128]{1,0:T(1,128)}', space=vmem, size = 0x12000, scoped, tag = 'internal scratch']
  %s0 = inlined_call_operand.hbm [shape: f32[2,2,2,128], index: 0, kind: input, shape index: {}]
  %s1 = inlined_call_operand.hbm [shape: s32[2,2,128], index: 1, kind: input, shape index: {}]
  %s2 = inlined_call_operand.hbm [shape: f32[2,1,1,128], index: 2, kind: output, shape index: {}]
  %s3 = sld [smem:[#allocation0]]
  $region49: #{tpu_custom_call.1} parent=0
    _
  %s5 = ssub.s32 1, %s3
  %s6 = scalar_select 0, %s5, %s3
  $region1: #{tpu_custom_call.1} parent=0
    #allocation2 [shape = 'u8[4096]{0}', space=vmem, size = 0x1000, scoped, tag = 'input window, operand 0']
    #allocation3 [shape = 's32[2]{0}', space=sflag, size = 0x8, scoped, tag = 'scoped memory for tpu_custom_call.1']
    #allocation4 [shape = 's32[2]{0}', space=sflag, size = 0x8, scoped, tag = 'scoped memory for tpu_custom_call.1']
    #allocation5 [shape = 'u8[2048]{0}', space=vmem, size = 0x800, scoped, tag = 'input window, operand 1']
    #allocation6 [shape = 's32[2]{0}', space=sflag, size = 0x8, scoped, tag = 'scoped memory for tpu_custom_call.1']
    #allocation7 [shape = 'u8[1024]{0}', space=vmem, size = 0x400, scoped, tag = 'output window, operand 0']
    %7 = vsyncpa [#allocation3], 0
    %s8 = scalar_lea.sflag [#allocation3], 1
    %9 = vsyncpa %s8, 0
    %10 = vsyncpa [#allocation6], 0
    %s11 = scalar_lea.sflag [#allocation6], 1
    %12 = vsyncpa %s11, 0
    %13 = vsyncpa [#allocation4], 0
    %s14 = scalar_lea.sflag [#allocation4], 1
    %15 = vsyncpa %s14, 0
    loop: start=0, step=1, limit=4
    $region2: #{tpu_custom_call.1} parent=1 // loop_pre_header
      _
    $region3: #{tpu_custom_call.1} parent=1 // loop_header
      %s17 = sphi 0, %s21
      %p18 = scmp.ge.s32.totalorder %s17, 4
      %s24 = sphi 0, %s36
      %s25 = sphi 0, %s32
      %s26 = sphi 0, %s24
      %s27 = sphi 0, %s25
      %s28 = sphi 0, %s26
      %s29 = sphi 0, %s27
      %s41 = sphi 0, %s43
      %s44 = sphi 0, %s41
      %s45 = sphi 0, %s44
      %s61 = sphi 0, %s45
      %s69 = sphi 0, %s71
      %s72 = sphi 0, %s69
      %s73 = sphi 0, %s72
      %s89 = sphi 0, %s73
      %s97 = sphi 0, %s99
      %s100 = sphi 0, %s97
      %s101 = sphi 0, %s100
      %s117 = sphi 0, %s101
    $region4: #{tpu_custom_call.1} parent=1 // loop_header_branch
      %20 = sbr.rel (%p18) target = $region8
    $region5: #{tpu_custom_call.1} parent=1 // loop_body
      %s22 = ssub.s32 %s17, 1
      %s23 = ssub.s32 %s17, 2
      %s30 = sadd.s32 1, %s25
      %p31 = scmp.ge.s32.totalorder %s30, 1
      %s32 = scalar_select %p31, 0, %s30
      %s33 = sadd.s32 1, %s24
      %s34 = scalar_select %p31, %s33, %s24
      %p35 = scmp.ge.s32.totalorder %s34, 2
      %s36 = scalar_select %p35, 0, %s34
      %s37 = ssub.s32 %s24, %s36
      %s38 = ssub.s32 %s25, %s32
      %s39 = sor.u32 %s37, %s38
      %p40 = scmp.eq.s32.totalorder %s39, 0
      %s42 = sadd.s32 %s41, 1
      %s43 = scalar_select %p40, %s41, %s42
      %p46 = pneg %p40
      %p47 = scmp.eq.s32.totalorder %s17, 1
      %p48 = por %p46, %p47
      %p49 = scmp.ne.s32.totalorder %s41, %s44
      %p50 = scmp.eq.s32.totalorder %s17, 0
      %p51 = por %p49, %p50
      %p52 = scmp.ne.s32.totalorder %s41, %s44
      %p53 = scmp.eq.s32.totalorder %s22, 1
      %p54 = por %p52, %p53
      %p55 = scmp.ne.s32.totalorder %s44, %s45
      %p56 = scmp.eq.s32.totalorder %s22, 0
      %p57 = por %p55, %p56
      %p58 = scmp.ne.s32.totalorder %s44, %s45
      %p59 = scmp.eq.s32.totalorder %s23, 1
      %p60 = por %p58, %p59
      %p62 = scmp.ne.s32.totalorder %s45, %s61
      %p63 = scmp.eq.s32.totalorder %s23, 0
      %p64 = por %p62, %p63
      %s65 = ssub.s32 %s24, %s36
      %s66 = ssub.s32 %s25, %s32
      %s67 = sor.u32 %s65, %s66
      %p68 = scmp.eq.s32.totalorder %s67, 0
      %s70 = sadd.s32 %s69, 1
      %s71 = scalar_select %p68, %s69, %s70
      %p74 = pneg %p68
      %p75 = scmp.eq.s32.totalorder %s17, 1
      %p76 = por %p74, %p75
      %p77 = scmp.ne.s32.totalorder %s69, %s72
      %p78 = scmp.eq.s32.totalorder %s17, 0
      %p79 = por %p77, %p78
      %p80 = scmp.ne.s32.totalorder %s69, %s72
      %p81 = scmp.eq.s32.totalorder %s22, 1
      %p82 = por %p80, %p81
      %p83 = scmp.ne.s32.totalorder %s72, %s73
      %p84 = scmp.eq.s32.totalorder %s22, 0
      %p85 = por %p83, %p84
      %p86 = scmp.ne.s32.totalorder %s72, %s73
      %p87 = scmp.eq.s32.totalorder %s23, 1
      %p88 = por %p86, %p87
      %p90 = scmp.ne.s32.totalorder %s73, %s89
      %p91 = scmp.eq.s32.totalorder %s23, 0
      %p92 = por %p90, %p91
      %s93 = ssub.s32 %s24, %s36
      %s94 = ssub.s32 %s25, %s32
      %s95 = sor.u32 %s93, %s94
      %p96 = scmp.eq.s32.totalorder %s95, 0
      %s98 = sadd.s32 %s97, 1
      %s99 = scalar_select %p96, %s97, %s98
      %p102 = pneg %p96
      %p103 = scmp.eq.s32.totalorder %s17, 1
      %p104 = por %p102, %p103
      %p105 = scmp.ne.s32.totalorder %s97, %s100
      %p106 = scmp.eq.s32.totalorder %s17, 0
      %p107 = por %p105, %p106
      %p108 = scmp.ne.s32.totalorder %s97, %s100
      %p109 = scmp.eq.s32.totalorder %s22, 1
      %p110 = por %p108, %p109
      %p111 = scmp.ne.s32.totalorder %s100, %s101
      %p112 = scmp.eq.s32.totalorder %s22, 0
      %p113 = por %p111, %p112
      %p114 = scmp.ne.s32.totalorder %s100, %s101
      %p115 = scmp.eq.s32.totalorder %s23, 1
      %p116 = por %p114, %p115
      %p118 = scmp.ne.s32.totalorder %s101, %s117
      %p119 = scmp.eq.s32.totalorder %s23, 0
      %p120 = por %p118, %p119
      %p121 = scmp.le.s32.totalorder 1, %s17
      %p122 = scmp.lt.s32.totalorder %s17, 3
      %p123 = pnand %p121, %p122
      %p124 = pneg %p123
      // Predicated region
      $region9: #{tpu_custom_call.1} parent=5 // pred_check
        _
      $region10: #{tpu_custom_call.1} parent=5 // pred_check_branch
        %126 = sbr.rel (%p123) target = $region12
      $region11: #{tpu_custom_call.1} parent=5 // pred_region
        %s127 = ssub.s32 %s17, 1
      $region12: #{tpu_custom_call.1} parent=5 // pred_fallthru
        _
      %p128 = scmp.lt.s32.totalorder %s17, 2
      // Predicated region
      $region13: #{tpu_custom_call.1} parent=5 // pred_check
        %p129 = pneg %p128
      $region14: #{tpu_custom_call.1} parent=5 // pred_check_branch
        %131 = sbr.rel (%p129) target = $region16
      $region15: #{tpu_custom_call.1} parent=5 // pred_region
        // Predicated region
        $region17: #{tpu_custom_call.1} parent=15 // pred_check
          %p132 = pneg %p51
        $region18: #{tpu_custom_call.1} parent=15 // pred_check_branch
          %134 = sbr.rel (%p132) target = $region20
        $region19: #{tpu_custom_call.1} parent=15 // pred_region
          %s135 = sand.u32 %s41, 1
          %s136 = scalar_lea.sflag [#allocation3], %s135
          %s137 = sand.u32 %s41, 1
          %s138 = smul.addr %s137, 4
          %s139 = scalar_lea.vmem [#allocation2], %s138
          %s141 = ssub.s32 64, 64
          %142 = vsyncadd %s136, %s141
          %s143 = smul.addr %s24, 2
          %s144 = sadd.s32 %s25, %s143
          %s145 = smul.addr %s144, 32
          %s146 = scalar_lea.hbm %s0, %s145
          %s147 = sshll.u32 %s139, 4
          %s148 = int_to_ptr.vmem [resolvable:$true] %s147
          %153 = dma.hbm_to_vmem [thread:$0]  %s146, 64, %s148, %s136, 32, 32, 2
        $region20: #{tpu_custom_call.1} parent=15 // pred_fallthru
          _
        // Predicated region
        $region21: #{tpu_custom_call.1} parent=15 // pred_check
          %p154 = pneg %p79
        $region22: #{tpu_custom_call.1} parent=15 // pred_check_branch
          %156 = sbr.rel (%p154) target = $region24
        $region23: #{tpu_custom_call.1} parent=15 // pred_region
          %s157 = sand.u32 %s69, 1
          %s158 = scalar_lea.sflag [#allocation6], %s157
          %s159 = sand.u32 %s69, 1
          %s160 = smul.addr %s159, 2
          %s161 = scalar_lea.vmem [#allocation5], %s160
          %s163 = ssub.s32 32, 32
          %164 = vsyncadd %s158, %s163
          %s165 = sadd.s32 %s25, %s24
          %s166 = smul.addr %s165, 32
          %s167 = scalar_lea.hbm %s1, %s166
          %s169 = sshll.u32 %s161, 4
          %s170 = int_to_ptr.vmem [resolvable:$true] %s169
          %172 = dma.hbm_to_vmem [thread:$0]  %s167, 32, %s170, %s158
        $region24: #{tpu_custom_call.1} parent=15 // pred_fallthru
          _
      $region16: #{tpu_custom_call.1} parent=5 // pred_fallthru
        _
      %p173 = scmp.le.s32.totalorder 1, %s17
      %p174 = scmp.lt.s32.totalorder %s17, 3
      %p175 = pnand %p173, %p174
      %p176 = pneg %p175
      // Predicated region
      $region25: #{tpu_custom_call.1} parent=5 // pred_check
        _
      $region26: #{tpu_custom_call.1} parent=5 // pred_check_branch
        %178 = sbr.rel (%p175) target = $region28
      $region27: #{tpu_custom_call.1} parent=5 // pred_region
        %s179 = ssub.s32 %s17, 1
        %s180 = sand.u32 %s44, 1
        %s181 = scalar_lea.sflag [#allocation3], %s180
        %s182 = sand.u32 %s44, 1
        %s183 = smul.addr %s182, 4
        %s184 = scalar_lea.vmem [#allocation2], %s183
        // Predicated region
        $region29: #{tpu_custom_call.1} parent=27 // pred_check
          %p185 = pneg %p57
        $region30: #{tpu_custom_call.1} parent=27 // pred_check_branch
          %187 = sbr.rel (%p185) target = $region32
        $region31: #{tpu_custom_call.1} parent=27 // pred_region
          %188 = dma.done %s181, 64
        $region32: #{tpu_custom_call.1} parent=27 // pred_fallthru
          _
        %s189 = sand.u32 %s72, 1
        %s190 = scalar_lea.sflag [#allocation6], %s189
        %s191 = sand.u32 %s72, 1
        %s192 = smul.addr %s191, 2
        %s193 = scalar_lea.vmem [#allocation5], %s192
        // Predicated region
        $region33: #{tpu_custom_call.1} parent=27 // pred_check
          %p194 = pneg %p85
        $region34: #{tpu_custom_call.1} parent=27 // pred_check_branch
          %196 = sbr.rel (%p194) target = $region36
        $region35: #{tpu_custom_call.1} parent=27 // pred_region
          %197 = dma.done %s190, 32
        $region36: #{tpu_custom_call.1} parent=27 // pred_fallthru
          _
        %s198 = sand.u32 %s44, 1
        %s199 = scalar_lea.sflag [#allocation3], %s198
        %s200 = sand.u32 %s44, 1
        %s201 = smul.addr %s200, 4
        %s202 = scalar_lea.vmem [#allocation2], %s201
        %p203 = pneg %p57
        %p204 = pneg %p54
        %s205 = sand.u32 %s72, 1
        %s206 = scalar_lea.sflag [#allocation6], %s205
        %s207 = sand.u32 %s72, 1
        %s208 = smul.addr %s207, 2
        %s209 = scalar_lea.vmem [#allocation5], %s208
        %p210 = pneg %p85
        %p211 = pneg %p82
        %p212 = pneg %p113
        %p213 = pneg %p110
        %s214 = sand.u32 %s100, 1
        %s215 = scalar_lea.sflag [#allocation4], %s214
        %s216 = sand.u32 %s100, 1
        %s217 = scalar_lea.vmem [#allocation7], %s216
        %v218 = vld [vmem:[%s184] sm:$0x3]
        %s219 = scalar_lea.vmem %s184, 2 [#allocation2]
        %v220 = vld [vmem:[%s219] sm:$0x3]
        %v221 = vsub.f32 %v220, %v218
        %v222 = vld [vmem:[%s193] sm:$0x3]
        %vm223 = vcmp.ne.s32.totalorder %v222, 0
        %v224 = vsub.f32 0.0, %v221
        %v225 = vsel %vm223, %v224, %v221
        %v226 = vmax.f32 %v225, 0.0
        %v227 = vand.u32 2147483647, %v221
        %v228 = vsub.f32 0.0, %v227
        %v229 = vmul.f32 %v228, 1.442695
        %v230 = vpow.pop %v229
        %v231 = vadd.f32 %v230, 1.0
        %v232 = vlog2.pop %v231
        %v233 = vmul.f32 %v232, 0.6931472
        %v234 = vadd.f32 %v226, %v233
        %vm235 = vcmask 1041408
        %v236 = vsel %vm235, %v234, 0.0
        %v237 = vrot.slane %v236, 4
        %v238 = vadd.f32 %v236, %v237
        %v239 = vrot.slane %v238, 2
        %v240 = vadd.f32 %v238, %v239
        %v241 = vrot.slane %v240, 1
        %v242 = vadd.f32 %v240, %v241
        %243 = vst [vmem:[%s217] sm:$0x1] %v242
        %s244 = sand.u32 %s100, 1
        %s245 = scalar_lea.sflag [#allocation4], %s244
        %s246 = sand.u32 %s100, 1
        %s247 = scalar_lea.vmem [#allocation7], %s246
        // Predicated region
        $region37: #{tpu_custom_call.1} parent=27 // pred_check
          %p248 = pneg %p110
        $region38: #{tpu_custom_call.1} parent=27 // pred_check_branch
          %250 = sbr.rel (%p248) target = $region40
        $region39: #{tpu_custom_call.1} parent=27 // pred_region
          %s252 = ssub.s32 16, 16
          %253 = vsyncadd %s245, %s252
          %s254 = sadd.s32 %s27, %s26
          %s255 = smul.addr %s254, 16
          %s256 = scalar_lea.hbm %s2, %s255
          %s258 = sshll.u32 %s247, 4
          %s259 = int_to_ptr.vmem [resolvable:$true] %s258
          %261 = dma.vmem_to_hbm [thread:$0]  %s259, 16, %s256, %s245
        $region40: #{tpu_custom_call.1} parent=27 // pred_fallthru
          _
      $region28: #{tpu_custom_call.1} parent=5 // pred_fallthru
        _
      %p262 = scmp.le.s32.totalorder 2, %s17
      // Predicated region
      $region41: #{tpu_custom_call.1} parent=5 // pred_check
        %p263 = pneg %p262
      $region42: #{tpu_custom_call.1} parent=5 // pred_check_branch
        %265 = sbr.rel (%p263) target = $region44
      $region43: #{tpu_custom_call.1} parent=5 // pred_region
        %s266 = ssub.s32 %s17, 2
        // Predicated region
        $region45: #{tpu_custom_call.1} parent=43 // pred_check
          %p267 = pneg %p116
        $region46: #{tpu_custom_call.1} parent=43 // pred_check_branch
          %269 = sbr.rel (%p267) target = $region48
        $region47: #{tpu_custom_call.1} parent=43 // pred_region
          %s270 = sand.u32 %s101, 1
          %s271 = scalar_lea.sflag [#allocation4], %s270
          %s272 = sand.u32 %s101, 1
          %s273 = scalar_lea.vmem [#allocation7], %s272
          %274 = dma.done %s271, 16
        $region48: #{tpu_custom_call.1} parent=43 // pred_fallthru
          _
      $region44: #{tpu_custom_call.1} parent=5 // pred_fallthru
        _
    $region6: #{tpu_custom_call.1} parent=1 // loop_footer
      %s21 = sadd.s32 1, %s17
    $region7: #{tpu_custom_call.1} parent=1 // loop_footer_branch
      %16 = sbr.rel target = $region3
    $region8: #{tpu_custom_call.1} parent=1 // loop_exit
      _
    %275 = vsyncpa [#allocation3], 1
    %s276 = scalar_lea.sflag [#allocation3], 1
    %277 = vsyncpa %s276, 1
    %278 = vsyncpa [#allocation6], 1
    %s279 = scalar_lea.sflag [#allocation6], 1
    %280 = vsyncpa %s279, 1
    %281 = vsyncpa [#allocation4], 1
    %s282 = scalar_lea.sflag [#allocation4], 1
    %283 = vsyncpa %s282, 1

</llo_original>
